<compile_context>
chip_gen: v7x
topology: tpu7x:2x2x1
jax: 0.10.0
libtpu: 0.0.40
codegen_flags: <defaults>
</compile_context>

<pallas_src>
import functools

import jax
import jax.numpy as jnp
from jax.experimental import pallas as pl
from jax.experimental.pallas import tpu as pltpu


def _focal_ce_kernel(logits_ref, tgt_ref, ce_ref, m_ref, s_ref, t_ref, *,
                     n_rows: int, n_cols: int,
                     c_is_ragged: bool, n_is_ragged: bool):
    """Per-tile online-logsumexp cross-entropy.

    logits_ref : (tile_n, tile_c) float  -- logits tile
    tgt_ref    : (tile_n, 1) int32       -- class indices (resident across j)
    ce_ref     : (tile_n, 1) float32     -- per-row CE (written on last class tile)
    m_ref/s_ref/t_ref : (tile_n, 1) f32 VMEM scratch
        running max / scaled sum-exp / target-logit accumulators.
    """
    i = pl.program_id(0)              # row-tile index   ("parallel")
    j = pl.program_id(1)              # class-tile index ("arbitrary" reduction)
    tile_n, tile_c = logits_ref.shape
    last_j = pl.num_programs(1) - 1

    @pl.when(j == 0)
    def _init():
        m_ref[...] = jnp.full(m_ref.shape, -jnp.inf, m_ref.dtype)
        s_ref[...] = jnp.zeros(s_ref.shape, s_ref.dtype)
        t_ref[...] = jnp.zeros(t_ref.shape, t_ref.dtype)

    # Local (per-tile) column index and local target index: avoids building a
    # global column index per element (the + j*tile_c add happens on a
    # (tile_n, 1) scalar-shaped vector instead of the full tile).
    local_col = jax.lax.broadcasted_iota(jnp.int32, (tile_n, tile_c), 1)
    tgt_local = tgt_ref[...] - j * tile_c          # (tile_n, 1) int32

    def update(valid):
        logits_nat = logits_ref[...]               # native dtype (bf16-friendly)
        if valid is not None:
            # Only on the last ragged class tile: mask garbage (OOB) columns.
            logits_nat = jnp.where(valid, logits_nat,
                                   jnp.asarray(-jnp.inf, logits_nat.dtype))
        # Tile max in native dtype (2x VALU rate for bf16 on v6e/v7x).
        tile_max = jnp.max(logits_nat, axis=-1,
                           keepdims=True).astype(jnp.float32)
        logits = logits_nat.astype(jnp.float32)    # upcast once for exp path

        # Online logsumexp update (f32 accumulation).
        m_prev = m_ref[...]
        m_new = jnp.maximum(m_prev, tile_max)
        e = jnp.exp(logits - m_new)
        if valid is not None:
            # Bulletproof against pathological inputs: padded lanes contribute
            # exactly zero to the sum-exp regardless of sentinel arithmetic.
            e = jnp.where(valid, e, 0.0)
        s_ref[...] = (s_ref[...] * jnp.exp(m_prev - m_new)
                      + jnp.sum(e, axis=-1, keepdims=True))
        m_ref[...] = m_new

        # Gather logits[row, target[row]] with a local iota compare
        # (target column is always in-range, so masking never affects it).
        t_ref[...] += jnp.sum(jnp.where(local_col == tgt_local, logits, 0.0),
                              axis=-1, keepdims=True)

    if c_is_ragged:
        # Interior tiles: no masking work at all on the hot streaming path.
        @pl.when(j != last_j)
        def _interior():
            update(None)

        # Last (ragged) class tile: mask out-of-range columns.
        @pl.when(j == last_j)
        def _ragged():
            update(local_col < (n_cols - j * tile_c))
    else:
        update(None)

    @pl.when(j == last_j)
    def _finalize():
        ce = (m_ref[...] + jnp.log(s_ref[...])) - t_ref[...]    # per-row CE
        if n_is_ragged:
            row = jax.lax.broadcasted_iota(jnp.int32, ce.shape, 0) + i * tile_n
            ce = jnp.where(row < n_rows, ce, 0.0)                # zero pad rows
        ce_ref[...] = ce


def focal_loss(logits, targets, *, gamma: float = 0.0,
               tile_n: int = 256, tile_c: int = 4096):
    """Pallas FocalLoss forward.  logits: (N, C) float, targets: (N,) int.

    Tile tuning: the double-buffered logits tile costs
    2 * tile_n * tile_c * itemsize bytes of VMEM.  Defaults (256 x 4096 f32
    -> 8 MiB) amortize per-grid-step overhead on v5e/v6e/v7x and fit every
    generation's VMEM (v7x: 64 MiB physical).  Grow tile_c (not tile_n) if
    you want bigger tiles -- (tile_n, 1) row-state is lane-sparse.
    """
    N, C = logits.shape
    itemsize = jnp.dtype(logits.dtype).itemsize
    sublane = {4: 8, 2: 16, 1: 32}.get(itemsize, 8)

    # Effective tiles: either the full dim (always a legal block) or a
    # multiple of the minimum (sublane, 128) tiling.  Ragged last tiles are
    # masked in-kernel, so N / C need not divide the tiles.
    tile_n_eff = N if N <= tile_n else max(sublane, (tile_n // sublane) * sublane)
    tile_c_eff = C if C <= tile_c else max(128, (tile_c // 128) * 128)

    grid_n = pl.cdiv(N, tile_n_eff)
    grid_c = pl.cdiv(C, tile_c_eff)
    n_is_ragged = (grid_n * tile_n_eff) != N
    c_is_ragged = (grid_c * tile_c_eff) != C

    targets_2d = targets.astype(jnp.int32).reshape(N, 1)

    kernel = functools.partial(_focal_ce_kernel, n_rows=N, n_cols=C,
                               c_is_ragged=c_is_ragged, n_is_ragged=n_is_ragged)

    # VMEM budget: double-buffered logits tile dominates.  Explicit scoped
    # limit with headroom, capped at 48 MiB so it is valid on every
    # generation (v7x: 64 MiB physical; v5e/v6e: 128 MiB).
    vmem_est = (2 * tile_n_eff * tile_c_eff * itemsize      # logits (2 bufs)
                + 7 * tile_n_eff * 128 * 4)                 # tgt/out/scratch
    vmem_limit = int(min(48 * 2**20, max(2 * vmem_est, 32 * 2**20)))

    cost = pl.CostEstimate(
        flops=6 * N * C,
        transcendentals=N * C,
        bytes_accessed=N * C * itemsize + N * 4 + grid_n * tile_n_eff * 4)

    ce = pl.pallas_call(
        kernel,
        out_shape=jax.ShapeDtypeStruct((grid_n * tile_n_eff, 1), jnp.float32),
        grid_spec=pltpu.PrefetchScalarGridSpec(
            num_scalar_prefetch=0,
            grid=(grid_n, grid_c),
            in_specs=[
                pl.BlockSpec((tile_n_eff, tile_c_eff), lambda i, j: (i, j)),
                pl.BlockSpec((tile_n_eff, 1), lambda i, j: (i, 0)),
            ],
            out_specs=pl.BlockSpec((tile_n_eff, 1), lambda i, j: (i, 0)),
            scratch_shapes=[
                pltpu.VMEM((tile_n_eff, 1), jnp.float32),   # running max
                pltpu.VMEM((tile_n_eff, 1), jnp.float32),   # running sum-exp
                pltpu.VMEM((tile_n_eff, 1), jnp.float32),   # target logit
            ],
        ),
        compiler_params=pltpu.CompilerParams(
            # Row axis "parallel" -> megacore sharding across TCs on v7x;
            # class axis is the online-logsumexp reduction -> "arbitrary".
            dimension_semantics=("parallel", "arbitrary"),
            vmem_limit_bytes=vmem_limit),
        cost_estimate=cost,
    )(logits, targets_2d)

    # Tiny epilogue in plain JAX: mean CE + focal transform (matches PyTorch).
    logp = jnp.sum(ce) / jnp.float32(N)
    p = jnp.exp(-logp)
    # Deliberate benign deviation from PyTorch: clamp (1-p) at 0 to guard
    # against fp rounding pushing p infinitesimally above 1 (CE >= 0 => p <= 1).
    base = jnp.maximum(1.0 - p, 0.0)
    return base ** jnp.float32(gamma) * logp


def _focal_loss_ref(logits, targets, gamma):
    """Pure-JAX reference matching torch.nn.CrossEntropyLoss + focal transform."""
    logits = logits.astype(jnp.float32)
    logz = jax.nn.logsumexp(logits, axis=-1)
    tgt_logit = jnp.take_along_axis(
        logits, targets.astype(jnp.int32)[:, None], axis=-1)[:, 0]
    logp = jnp.mean(logz - tgt_logit)
    p = jnp.exp(-logp)
    return (1.0 - p) ** gamma * logp


if __name__ == "__main__":
    key = jax.random.PRNGKey(0)
    k_logits, k_tgt = jax.random.split(key)

    # Small shapes deliberately NOT multiples of the small tiles below so the
    # ragged row / class masking paths get exercised.
    N, C = 20, 160
    logits = jax.random.normal(k_logits, (N, C), dtype=jnp.float32)
    targets = jax.random.randint(k_tgt, (N,), 0, C, dtype=jnp.int32)

    ok = True
    for gamma in (0.0, 2.0):           # module default gamma=0; also gamma=2
        ref = _focal_loss_ref(logits, targets, gamma)
        # (a) default tiling -> single (N, C) block, no ragged masking emitted;
        # (b) large explicit tiles -> same single-block path;
        # (c) tiny tiles -> 3x2 grid exercising online logsumexp + ragged
        #     row/class masking (pl.when interior/last-tile split).
        for tn, tc in ((256, 4096), (512, 1024), (8, 128)):
            out = jax.block_until_ready(
                focal_loss(logits, targets, gamma=gamma, tile_n=tn, tile_c=tc))
            if not jnp.allclose(out, ref, rtol=1e-5, atol=1e-5):
                ok = False
                print(f"MISMATCH gamma={gamma} tiles=({tn},{tc}): "
                      f"pallas={out}, ref={ref}")

    if ok:
        print("KERNEL_OK")
</pallas_src>

<mosaic_0001>
module attributes {stable_mosaic.version = 11 : i64} {
  func.func @_focal_ce_kernel(%arg0: i32, %arg1: i32, %arg2: memref<20x160xf32, #tpu.memory_space<vmem>>, %arg3: memref<20x1xi32, #tpu.memory_space<vmem>>, %arg4: memref<20x1xf32, #tpu.memory_space<vmem>>, %arg5: memref<20x1xf32, #tpu.memory_space<vmem>>, %arg6: memref<20x1xf32, #tpu.memory_space<vmem>>, %arg7: memref<20x1xf32, #tpu.memory_space<vmem>>) attributes {dimension_semantics = [#tpu.dimension_semantics<parallel>, #tpu.dimension_semantics<arbitrary>], iteration_bounds = array<i64: 1, 1>, scalar_prefetch = 0 : i64, scratch_operands = 3 : i64, tpu.core_type = #tpu.core_type<tc>, window_params = [{transform_indices = @transform_0, window_bounds = array<i64: 20, 160>}, {transform_indices = @transform_1, window_bounds = array<i64: 20, 1>}, {transform_indices = @transform_2, window_bounds = array<i64: 20, 1>}]} {
    %c0_i32 = arith.constant 0 : i32
    %0 = arith.cmpi eq, %arg1, %c0_i32 : i32
    %1 = arith.extui %0 : i1 to i32
    %c0_i32_0 = arith.constant 0 : i32
    %2 = arith.cmpi ne, %1, %c0_i32_0 : i32
    scf.if %2 {
      %cst_21 = arith.constant 0xFF800000 : f32
      %37 = vector.broadcast %cst_21 : f32 to vector<20x1xf32>
      %c0_22 = arith.constant 0 : index
      %c0_23 = arith.constant 0 : index
      %38 = vector.load %arg5[%c0_22, %c0_23] : memref<20x1xf32, #tpu.memory_space<vmem>>, vector<20x1xf32>
      tpu.vector_store %arg5[%c0_22, %c0_23], %37 {strides = array<i32>} : memref<20x1xf32, #tpu.memory_space<vmem>>, vector<20x1xf32>,
      %cst_24 = arith.constant 0.000000e+00 : f32
      %39 = vector.broadcast %cst_24 : f32 to vector<20x1xf32>
      %c0_25 = arith.constant 0 : index
      %c0_26 = arith.constant 0 : index
      %40 = vector.load %arg6[%c0_25, %c0_26] : memref<20x1xf32, #tpu.memory_space<vmem>>, vector<20x1xf32>
      tpu.vector_store %arg6[%c0_25, %c0_26], %39 {strides = array<i32>} : memref<20x1xf32, #tpu.memory_space<vmem>>, vector<20x1xf32>,
      %cst_27 = arith.constant 0.000000e+00 : f32
      %41 = vector.broadcast %cst_27 : f32 to vector<20x1xf32>
      %c0_28 = arith.constant 0 : index
      %c0_29 = arith.constant 0 : index
      %42 = vector.load %arg7[%c0_28, %c0_29] : memref<20x1xf32, #tpu.memory_space<vmem>>, vector<20x1xf32>
      tpu.vector_store %arg7[%c0_28, %c0_29], %41 {strides = array<i32>} : memref<20x1xf32, #tpu.memory_space<vmem>>, vector<20x1xf32>,
    } else {
    }
    %3 = tpu.iota {dimensions = array<i32: 1>} : vector<20x160xi32>
    %c0 = arith.constant 0 : index
    %c0_1 = arith.constant 0 : index
    %4 = vector.load %arg3[%c0, %c0_1] : memref<20x1xi32, #tpu.memory_space<vmem>>, vector<20x1xi32>
    %c160_i32 = arith.constant 160 : i32
    %5 = arith.muli %arg1, %c160_i32 : i32
    %6 = vector.broadcast %5 : i32 to vector<20x1xi32>
    %7 = arith.subi %4, %6 : vector<20x1xi32>
    %c0_2 = arith.constant 0 : index
    %c0_3 = arith.constant 0 : index
    %8 = vector.load %arg2[%c0_2, %c0_3] : memref<20x160xf32, #tpu.memory_space<vmem>>, vector<20x160xf32>
    %cst = arith.constant dense<0xFF800000> : vector<20xf32>
    %9 = vector.multi_reduction <maximumf>, %8, %cst [1] : vector<20x160xf32> to vector<20xf32>
    %10 = vector.shape_cast %9 : vector<20xf32> to vector<20x1xf32>
    %c0_4 = arith.constant 0 : index
    %c0_5 = arith.constant 0 : index
    %11 = vector.load %arg5[%c0_4, %c0_5] : memref<20x1xf32, #tpu.memory_space<vmem>>, vector<20x1xf32>
    %12 = arith.maximumf %11, %10 : vector<20x1xf32>
    %13 = vector.broadcast %12 : vector<20x1xf32> to vector<20x160xf32>
    %14 = arith.subf %8, %13 : vector<20x160xf32>
    %15 = math.exp %14 : vector<20x160xf32>
    %c0_6 = arith.constant 0 : index
    %c0_7 = arith.constant 0 : index
    %16 = vector.load %arg6[%c0_6, %c0_7] : memref<20x1xf32, #tpu.memory_space<vmem>>, vector<20x1xf32>
    %17 = arith.subf %11, %12 : vector<20x1xf32>
    %18 = math.exp %17 : vector<20x1xf32>
    %19 = arith.mulf %16, %18 : vector<20x1xf32>
    %cst_8 = arith.constant dense<0.000000e+00> : vector<20xf32>
    %20 = vector.multi_reduction <add>, %15, %cst_8 [1] : vector<20x160xf32> to vector<20xf32>
    %21 = vector.shape_cast %20 : vector<20xf32> to vector<20x1xf32>
    %22 = arith.addf %19, %21 : vector<20x1xf32>
    %c0_9 = arith.constant 0 : index
    %c0_10 = arith.constant 0 : index
    %23 = vector.load %arg6[%c0_9, %c0_10] : memref<20x1xf32, #tpu.memory_space<vmem>>, vector<20x1xf32>
    tpu.vector_store %arg6[%c0_9, %c0_10], %22 {strides = array<i32>} : memref<20x1xf32, #tpu.memory_space<vmem>>, vector<20x1xf32>,
    %c0_11 = arith.constant 0 : index
    %c0_12 = arith.constant 0 : index
    %24 = vector.load %arg5[%c0_11, %c0_12] : memref<20x1xf32, #tpu.memory_space<vmem>>, vector<20x1xf32>
    tpu.vector_store %arg5[%c0_11, %c0_12], %12 {strides = array<i32>} : memref<20x1xf32, #tpu.memory_space<vmem>>, vector<20x1xf32>,
    %c0_13 = arith.constant 0 : index
    %c0_14 = arith.constant 0 : index
    %25 = vector.load %arg7[%c0_13, %c0_14] : memref<20x1xf32, #tpu.memory_space<vmem>>, vector<20x1xf32>
    %26 = vector.broadcast %7 : vector<20x1xi32> to vector<20x160xi32>
    %27 = arith.cmpi eq, %3, %26 : vector<20x160xi32>
    %cst_15 = arith.constant 0.000000e+00 : f32
    %28 = vector.broadcast %cst_15 : f32 to vector<20x160xf32>
    %29 = arith.select %27, %8, %28 : vector<20x160xi1>, vector<20x160xf32>
    %cst_16 = arith.constant dense<0.000000e+00> : vector<20xf32>
    %30 = vector.multi_reduction <add>, %29, %cst_16 [1] : vector<20x160xf32> to vector<20xf32>
    %31 = vector.shape_cast %30 : vector<20xf32> to vector<20x1xf32>
    %32 = arith.addf %25, %31 : vector<20x1xf32>
    %c0_17 = arith.constant 0 : index
    %c0_18 = arith.constant 0 : index
    %33 = vector.load %arg7[%c0_17, %c0_18] : memref<20x1xf32, #tpu.memory_space<vmem>>, vector<20x1xf32>
    tpu.vector_store %arg7[%c0_17, %c0_18], %32 {strides = array<i32>} : memref<20x1xf32, #tpu.memory_space<vmem>>, vector<20x1xf32>,
    %c0_i32_19 = arith.constant 0 : i32
    %34 = arith.cmpi eq, %arg1, %c0_i32_19 : i32
    %35 = arith.extui %34 : i1 to i32
    %c0_i32_20 = arith.constant 0 : i32
    %36 = arith.cmpi ne, %35, %c0_i32_20 : i32
    scf.if %36 {
      %c0_21 = arith.constant 0 : index
      %c0_22 = arith.constant 0 : index
      %37 = vector.load %arg5[%c0_21, %c0_22] : memref<20x1xf32, #tpu.memory_space<vmem>>, vector<20x1xf32>
      %c0_23 = arith.constant 0 : index
      %c0_24 = arith.constant 0 : index
      %38 = vector.load %arg6[%c0_23, %c0_24] : memref<20x1xf32, #tpu.memory_space<vmem>>, vector<20x1xf32>
      %39 = math.log %38 : vector<20x1xf32>
      %40 = arith.addf %37, %39 : vector<20x1xf32>
      %c0_25 = arith.constant 0 : index
      %c0_26 = arith.constant 0 : index
      %41 = vector.load %arg7[%c0_25, %c0_26] : memref<20x1xf32, #tpu.memory_space<vmem>>, vector<20x1xf32>
      %42 = arith.subf %40, %41 : vector<20x1xf32>
      %c0_27 = arith.constant 0 : index
      %c0_28 = arith.constant 0 : index
      %43 = vector.load %arg4[%c0_27, %c0_28] : memref<20x1xf32, #tpu.memory_space<vmem>>, vector<20x1xf32>
      tpu.vector_store %arg4[%c0_27, %c0_28], %42 {strides = array<i32>} : memref<20x1xf32, #tpu.memory_space<vmem>>, vector<20x1xf32>,
    } else {
    }
    return
  }
  func.func @transform_0(%arg0: i32, %arg1: i32) -> (i32, i32) {
    %c0_i32 = arith.constant 0 : i32
    return %arg0, %arg1 : i32, i32
  }
  func.func @transform_1(%arg0: i32, %arg1: i32) -> (i32, i32) {
    %c0_i32 = arith.constant 0 : i32
    %c0_i32_0 = arith.constant 0 : i32
    return %arg0, %c0_i32 : i32, i32
  }
  func.func @transform_2(%arg0: i32, %arg1: i32) -> (i32, i32) {
    %c0_i32 = arith.constant 0 : i32
    %c0_i32_0 = arith.constant 0 : i32
    return %arg0, %c0_i32 : i32, i32
  }
}

</mosaic_0001>

<llo_original>
// kernel: tpu_custom_call.1
$region0: #{tpu_custom_call.1}
  #allocation0 [shape = 'u32[]', space=smem, size = 0x4, offset = 0x4, fixed_abs, tag = 'smem constant byte address 0x4 - core index']
  #allocation1 [shape = 'u32[144,128]{1,0:T(1,128)}', space=vmem, size = 0x12000, scoped, tag = 'internal scratch']
  #allocation2 [shape = 'f32[20,1]{1,0:T(8,128)}', space=vmem, size = 0x3000, scoped, tag = 'scratch operand']
  #allocation3 [shape = 'f32[20,1]{1,0:T(8,128)}', space=vmem, size = 0x3000, scoped, tag = 'scratch operand']
  #allocation4 [shape = 'f32[20,1]{1,0:T(8,128)}', space=vmem, size = 0x3000, scoped, tag = 'scratch operand']
  %s0 = inlined_call_operand.hbm [shape: f32[20,160], index: 0, kind: input, shape index: {}]
  %s1 = inlined_call_operand.vmem [shape: s32[20,1], index: 1, kind: input, shape index: {}]
  %s2 = inlined_call_operand.vmem [shape: f32[20,1], index: 2, kind: output, shape index: {}]
  %s3 = sld [smem:[#allocation0]]
  $region30: #{tpu_custom_call.1} parent=0
    _
  %s5 = ssub.s32 1, %s3
  %s6 = scalar_select 0, %s5, %s3
  $region1: #{tpu_custom_call.1} parent=0
    #allocation5 [shape = 'u8[24576]{0}', space=vmem, size = 0x6000, scoped, tag = 'input window, operand 0, single buffered']
    #allocation6 [shape = 's32[1]{0}', space=sflag, size = 0x4, scoped, tag = 'scoped memory for tpu_custom_call.1']
    %7 = vsyncpa [#allocation6], 0
    // Predicated region
    $region2: #{tpu_custom_call.1} parent=1 // pred_check
      _
    $region3: #{tpu_custom_call.1} parent=1 // pred_check_branch
      %9 = sbr.rel (0) target = $region5
    $region4: #{tpu_custom_call.1} parent=1 // pred_region
      %s11 = ssub.s32 768, 768
      %12 = vsyncadd [#allocation6], %s11
      %s13 = sshll.u32 [#allocation5], 4
      %s14 = int_to_ptr.vmem [resolvable:$true] %s13
      %19 = dma.hbm_to_vmem [thread:$0]  %s0, 768, %s14, [#allocation6], 256, 256, 16
    $region5: #{tpu_custom_call.1} parent=1 // pred_fallthru
      _
    // Predicated region
    $region6: #{tpu_custom_call.1} parent=1 // pred_check
      _
    $region7: #{tpu_custom_call.1} parent=1 // pred_check_branch
      %21 = sbr.rel (0) target = $region9
    $region8: #{tpu_custom_call.1} parent=1 // pred_region
      _
    $region9: #{tpu_custom_call.1} parent=1 // pred_fallthru
      _
    // Predicated region
    $region10: #{tpu_custom_call.1} parent=1 // pred_check
      _
    $region11: #{tpu_custom_call.1} parent=1 // pred_check_branch
      %23 = sbr.rel (0) target = $region13
    $region12: #{tpu_custom_call.1} parent=1 // pred_region
      %24 = dma.done [#allocation6], 768
    $region13: #{tpu_custom_call.1} parent=1 // pred_fallthru
      _
    %p25 = scmp.eq.s32.totalorder 0, 0
    // Predicated region
    $region14: #{tpu_custom_call.1} parent=1 // pred_check
      %p26 = pneg %p25
    $region15: #{tpu_custom_call.1} parent=1 // pred_check_branch
      %28 = sbr.rel (%p26) target = $region17
    $region16: #{tpu_custom_call.1} parent=1 // pred_region
      %vm29 = vcmask 7168
      %30 = vst.msk [vmem:[#allocation2] sm:$0xff] %vm29, -inf
      %31 = vst.msk [vmem:[#allocation2 + $0x8] sm:$0xff] %vm29, -inf
      %vm32 = vcmask 3072
      %33 = vst.msk [vmem:[#allocation2 + $0x10] sm:$0xf] %vm32, -inf
      %34 = vst.msk [vmem:[#allocation3] sm:$0xff] %vm29, 0.0
      %35 = vst.msk [vmem:[#allocation3 + $0x8] sm:$0xff] %vm29, 0.0
      %36 = vst.msk [vmem:[#allocation3 + $0x10] sm:$0xf] %vm32, 0.0
      %37 = vst.msk [vmem:[#allocation4] sm:$0xff] %vm29, 0.0
      %38 = vst.msk [vmem:[#allocation4 + $0x8] sm:$0xff] %vm29, 0.0
      %39 = vst.msk [vmem:[#allocation4 + $0x10] sm:$0xf] %vm32, 0.0
    $region17: #{tpu_custom_call.1} parent=1 // pred_fallthru
      _
    %v40 = vlaneseq
    %v41 = vand.u32 %v40, 127
    %v42 = vadd.s32 %v41, 128
    %v43 = vld [vmem:[%s1] sm:$0xff]
    %v44 = vld [vmem:[%s1 + $0x8] sm:$0xff]
    %v45 = vld [vmem:[%s1 + $0x10] sm:$0xf]
    %s46 = smul.u32 0, 160
    %v47 = vstv %s46
    %v48 = vsub.s32 %v43, %v47
    %v49 = vsub.s32 %v44, %v47
    %v50 = vsub.s32 %v45, %v47
    %v51 = vld [vmem:[#allocation5] sm:$0xff]
    %v52 = vld [vmem:[#allocation5 + $0x8] sm:$0xff]
    %v53 = vld [vmem:[#allocation5 + $0x10] sm:$0xff]
    %v54 = vld [vmem:[#allocation5 + $0x18] sm:$0xff]
    %v55 = vld [vmem:[#allocation5 + $0x20] sm:$0xf]
    %v56 = vld [vmem:[#allocation5 + $0x28] sm:$0xf]
    %vm57 = vcmask 261120
    %v58 = vsel %vm57, %v52, -inf
    %v59 = vmax.f32 %v51, %v58
    %60 = vmax.xlane.f32.xlu0 %v59
    %v61 = vpop.xlane.xlu0 %60
    %v62 = vsel %vm57, %v54, -inf
    %v63 = vmax.f32 %v53, %v62
    %64 = vmax.xlane.f32.xlu0 %v63
    %v65 = vpop.xlane.xlu0 %64
    %vm66 = vcmask 1043456
    %v67 = vsel %vm66, %v55, -inf
    %vm68 = vcmask 257024
    %v69 = vsel %vm68, %v56, -inf
    %v70 = vmax.f32 %v67, %v69
    %71 = vmax.xlane.f32.xlu0 %v70
    %v72 = vpop.xlane.xlu0 %71
    %v73 = vld [vmem:[#allocation2] sm:$0xff]
    %v74 = vld [vmem:[#allocation2 + $0x8] sm:$0xff]
    %v75 = vld [vmem:[#allocation2 + $0x10] sm:$0xf]
    %v76 = vmax.f32 %v73, %v61
    %v77 = vmax.f32 %v74, %v65
    %v78 = vmax.f32 %v75, %v72
    %80 = vset.pattern.permute.xlu0 0
    %81 = vperm.xlu0 %80, %v76
    %v82 = vpop.permute.xlu0 %81
    %85 = vset.pattern.permute.xlu0 0
    %86 = vperm.xlu0 %85, %v77
    %v87 = vpop.permute.xlu0 %86
    %90 = vset.pattern.permute.xlu0 0
    %91 = vperm.xlu0 %90, %v78
    %v92 = vpop.permute.xlu0 %91
    %v94 = vsub.f32 %v51, %v82
    %v95 = vsub.f32 %v52, %v82
    %v96 = vsub.f32 %v53, %v87
    %v97 = vsub.f32 %v54, %v87
    %v98 = vsub.f32 %v55, %v92
    %v99 = vsub.f32 %v56, %v92
    %v100 = vmul.f32 %v94, 1.442695
    %v101 = vpow.pop %v100
    %v102 = vmul.f32 %v95, 1.442695
    %v103 = vpow.pop %v102
    %v104 = vmul.f32 %v96, 1.442695
    %v105 = vpow.pop %v104
    %v106 = vmul.f32 %v97, 1.442695
    %v107 = vpow.pop %v106
    %v108 = vmul.f32 %v98, 1.442695
    %v109 = vpow.pop %v108
    %v110 = vmul.f32 %v99, 1.442695
    %v111 = vpow.pop %v110
    %v112 = vld [vmem:[#allocation3] sm:$0xff]
    %v113 = vld [vmem:[#allocation3 + $0x8] sm:$0xff]
    %v114 = vld [vmem:[#allocation3 + $0x10] sm:$0xf]
    %v115 = vsub.f32 %v73, %v76
    %v116 = vsub.f32 %v74, %v77
    %v117 = vsub.f32 %v75, %v78
    %v118 = vmul.f32 %v115, 1.442695
    %v119 = vpow.pop %v118
    %v120 = vmul.f32 %v116, 1.442695
    %v121 = vpow.pop %v120
    %v122 = vmul.f32 %v117, 1.442695
    %v123 = vpow.pop %v122
    %v124 = vmul.f32 %v112, %v119
    %v125 = vmul.f32 %v113, %v121
    %v126 = vmul.f32 %v114, %v123
    %v127 = vsel %vm57, %v103, 0.0
    %v128 = vadd.f32 %v101, %v127
    %129 = vadd.xlane.f32.xlu0 %v128
    %v130 = vpop.xlane.xlu0 %129
    %v131 = vsel %vm57, %v107, 0.0
    %v132 = vadd.f32 %v105, %v131
    %133 = vadd.xlane.f32.xlu0 %v132
    %v134 = vpop.xlane.xlu0 %133
    %v135 = vsel %vm66, %v109, 0.0
    %v136 = vsel %vm68, %v111, 0.0
    %v137 = vadd.f32 %v135, %v136
    %138 = vadd.xlane.f32.xlu0 %v137
    %v139 = vpop.xlane.xlu0 %138
    %v140 = vadd.f32 %v124, %v130
    %v141 = vadd.f32 %v125, %v134
    %v142 = vadd.f32 %v126, %v139
    %vm143 = vcmask 7168
    %144 = vst.msk [vmem:[#allocation3] sm:$0xff] %vm143, %v140
    %145 = vst.msk [vmem:[#allocation3 + $0x8] sm:$0xff] %vm143, %v141
    %vm146 = vcmask 3072
    %147 = vst.msk [vmem:[#allocation3 + $0x10] sm:$0xf] %vm146, %v142
    %148 = vst.msk [vmem:[#allocation2] sm:$0xff] %vm143, %v76
    %149 = vst.msk [vmem:[#allocation2 + $0x8] sm:$0xff] %vm143, %v77
    %150 = vst.msk [vmem:[#allocation2 + $0x10] sm:$0xf] %vm146, %v78
    %v151 = vld [vmem:[#allocation4] sm:$0xff]
    %v152 = vld [vmem:[#allocation4 + $0x8] sm:$0xff]
    %v153 = vld [vmem:[#allocation4 + $0x10] sm:$0xf]
    %154 = vset.pattern.permute.xlu0 0
    %155 = vperm.xlu0 %154, %v48
    %v156 = vpop.permute.xlu0 %155
    %157 = vset.pattern.permute.xlu0 0
    %158 = vperm.xlu0 %157, %v49
    %v159 = vpop.permute.xlu0 %158
    %160 = vset.pattern.permute.xlu0 0
    %161 = vperm.xlu0 %160, %v50
    %v162 = vpop.permute.xlu0 %161
    %vm163 = vcmp.eq.s32.totalorder %v41, %v156
    %vm164 = vcmp.eq.s32.totalorder %v42, %v156
    %vm165 = vcmp.eq.s32.totalorder %v41, %v159
    %vm166 = vcmp.eq.s32.totalorder %v42, %v159
    %vm167 = vcmp.eq.s32.totalorder %v41, %v162
    %vm168 = vcmp.eq.s32.totalorder %v42, %v162
    %v169 = vsel %vm163, %v51, 0.0
    %v170 = vsel %vm164, %v52, 0.0
    %v171 = vsel %vm165, %v53, 0.0
    %v172 = vsel %vm166, %v54, 0.0
    %v173 = vsel %vm167, %v55, 0.0
    %v174 = vsel %vm168, %v56, 0.0
    %v175 = vsel %vm57, %v170, 0.0
    %v176 = vadd.f32 %v169, %v175
    %177 = vadd.xlane.f32.xlu0 %v176
    %v178 = vpop.xlane.xlu0 %177
    %v179 = vsel %vm57, %v172, 0.0
    %v180 = vadd.f32 %v171, %v179
    %181 = vadd.xlane.f32.xlu0 %v180
    %v182 = vpop.xlane.xlu0 %181
    %v183 = vsel %vm66, %v173, 0.0
    %v184 = vsel %vm68, %v174, 0.0
    %v185 = vadd.f32 %v183, %v184
    %186 = vadd.xlane.f32.xlu0 %v185
    %v187 = vpop.xlane.xlu0 %186
    %v188 = vadd.f32 %v151, %v178
    %v189 = vadd.f32 %v152, %v182
    %v190 = vadd.f32 %v153, %v187
    %191 = vst.msk [vmem:[#allocation4] sm:$0xff] %vm143, %v188
    %192 = vst.msk [vmem:[#allocation4 + $0x8] sm:$0xff] %vm143, %v189
    %193 = vst.msk [vmem:[#allocation4 + $0x10] sm:$0xf] %vm146, %v190
    // Predicated region
    $region18: #{tpu_custom_call.1} parent=1 // pred_check
      %p194 = pneg %p25
    $region19: #{tpu_custom_call.1} parent=1 // pred_check_branch
      %196 = sbr.rel (%p194) target = $region21
    $region20: #{tpu_custom_call.1} parent=1 // pred_region
      %v197 = vld [vmem:[#allocation2] sm:$0xff]
      %v198 = vld [vmem:[#allocation2 + $0x8] sm:$0xff]
      %v199 = vld [vmem:[#allocation2 + $0x10] sm:$0xf]
      %v200 = vld [vmem:[#allocation3] sm:$0xff]
      %v201 = vld [vmem:[#allocation3 + $0x8] sm:$0xff]
      %v202 = vld [vmem:[#allocation3 + $0x10] sm:$0xf]
      %v203 = vlog2.pop %v200
      %v204 = vmul.f32 %v203, 0.6931472
      %v205 = vlog2.pop %v201
      %v206 = vmul.f32 %v205, 0.6931472
      %v207 = vlog2.pop %v202
      %v208 = vmul.f32 %v207, 0.6931472
      %v209 = vadd.f32 %v197, %v204
      %v210 = vadd.f32 %v198, %v206
      %v211 = vadd.f32 %v199, %v208
      %v212 = vld [vmem:[#allocation4] sm:$0xff]
      %v213 = vld [vmem:[#allocation4 + $0x8] sm:$0xff]
      %v214 = vld [vmem:[#allocation4 + $0x10] sm:$0xf]
      %v215 = vsub.f32 %v209, %v212
      %v216 = vsub.f32 %v210, %v213
      %v217 = vsub.f32 %v211, %v214
      %218 = vst.msk [vmem:[%s2] sm:$0xff] %vm143, %v215
      %219 = vst.msk [vmem:[%s2 + $0x8] sm:$0xff] %vm143, %v216
      %220 = vst.msk [vmem:[%s2 + $0x10] sm:$0xf] %vm146, %v217
    $region21: #{tpu_custom_call.1} parent=1 // pred_fallthru
      _
    // Predicated region
    $region22: #{tpu_custom_call.1} parent=1 // pred_check
      _
    $region23: #{tpu_custom_call.1} parent=1 // pred_check_branch
      %222 = sbr.rel (0) target = $region25
    $region24: #{tpu_custom_call.1} parent=1 // pred_region
      _
    $region25: #{tpu_custom_call.1} parent=1 // pred_fallthru
      _
    // Predicated region
    $region26: #{tpu_custom_call.1} parent=1 // pred_check
      _
    $region27: #{tpu_custom_call.1} parent=1 // pred_check_branch
      %224 = sbr.rel (0) target = $region29
    $region28: #{tpu_custom_call.1} parent=1 // pred_region
      _
    $region29: #{tpu_custom_call.1} parent=1 // pred_fallthru
      _
    %225 = vsyncpa [#allocation6], 1

</llo_original>
